<compile_context>
chip_gen: v7x
topology: tpu7x:2x2x1
jax: 0.10.0
libtpu: 0.0.40
codegen_flags: <defaults>
</compile_context>

<pallas_src>
import math

import jax
import jax.numpy as jnp
from jax.experimental import pallas as pl
from jax.experimental.pallas import tpu as pltpu

COS_EPS = 1e-8  # torch.nn.CosineSimilarity default eps


def _round_up(x, m):
    return ((x + m - 1) // m) * m


def _pick_tile(B, block_b):
    """Batch tile: multiple of 8 sublanes, capped at block_b.  For mid-sized
    batches keep >= 2 grid steps so the "parallel" axis can be split across
    v7x's two TensorCores instead of running one oversized step."""
    tb = min(block_b, _round_up(B, 8))
    if B > 8 and _round_up(B, tb) // tb < 2:
        tb = max(8, min(tb, _round_up((B + 1) // 2, 8)))
    return tb


def coembed_cosine_kernel(drug_ref, target_ref,
                          wd_ref, bd_ref, wt_ref, bt_ref,
                          out_ref):
    """One batch tile:
         d = relu(drug @ Wd + bd)                       (tb, L)
         t = relu(target @ Wt + bt)                     (tb, L)
         out = <d, t> * rsqrt(max(||d||^2 ||t||^2, eps^2))   (tb, 1)
    """
    # --- projections: bf16 MXU matmuls, f32 accumulation, f32 bias + ReLU ---
    dp = jnp.dot(drug_ref[...], wd_ref[...], preferred_element_type=jnp.float32)
    dp = jnp.maximum(dp + bd_ref[...], 0.0)            # latent_activation = ReLU

    tp = jnp.dot(target_ref[...], wt_ref[...], preferred_element_type=jnp.float32)
    tp = jnp.maximum(tp + bt_ref[...], 0.0)

    # --- cosine similarity along the latent dimension (f32, per row) ---
    num = jnp.sum(dp * tp, axis=-1, keepdims=True)      # (tb, 1)
    nd = jnp.sum(dp * dp, axis=-1, keepdims=True)
    nt = jnp.sum(tp * tp, axis=-1, keepdims=True)
    # sqrt is monotone => num/max(sqrt(nd*nt), eps) == num*rsqrt(max(nd*nt, eps^2)).
    # rsqrt runs on the EUP (free slot) instead of the VALU divide/sqrt.
    out_ref[...] = num * jax.lax.rsqrt(jnp.maximum(nd * nt, COS_EPS * COS_EPS))


def _build_call(tb, padB, Dd, Dt, L, single_buffer_weights, vmem_limit_bytes):
    # Weights/biases have constant index_maps -> they never change block index,
    # so double buffering is wasted VMEM.  Buffered(1) single-buffers them.
    w_kw = dict(pipeline_mode=pl.Buffered(1)) if single_buffer_weights else {}
    return pl.pallas_call(
        coembed_cosine_kernel,
        out_shape=jax.ShapeDtypeStruct((padB, 1), jnp.float32),
        grid=(padB // tb,),
        in_specs=[
            pl.BlockSpec((tb, Dd), lambda i: (i, 0)),            # drug batch tile (bf16)
            pl.BlockSpec((tb, Dt), lambda i: (i, 0)),            # target batch tile (bf16)
            pl.BlockSpec((Dd, L), lambda i: (0, 0), **w_kw),     # Wd  (VMEM-resident)
            pl.BlockSpec((1, L), lambda i: (0, 0), **w_kw),      # bd
            pl.BlockSpec((Dt, L), lambda i: (0, 0), **w_kw),     # Wt
            pl.BlockSpec((1, L), lambda i: (0, 0), **w_kw),      # bt
        ],
        out_specs=pl.BlockSpec((tb, 1), lambda i: (i, 0)),
        compiler_params=pltpu.CompilerParams(
            dimension_semantics=("parallel",),
            vmem_limit_bytes=vmem_limit_bytes),
    )


def simple_coembedding_classify(drug, target, params, *, block_b=256,
                                vmem_limit_bytes=48 * 1024 * 1024):
    """drug: (B, drug_shape); target: (B, target_shape) -> (B,) f32 cosine.

    block_b: batch-tile sweep knob (256 good default for v6e/v7x; 128 for v5e)."""
    B, Dd = drug.shape
    B2, Dt = target.shape
    assert B == B2
    L = params["wd"].shape[1]

    # bf16 activations end-to-end: halves input DMA bytes and deletes the
    # per-tile VPU convert inside the kernel (matmul accumulates in f32 anyway).
    drug = drug.astype(jnp.bfloat16)
    target = target.astype(jnp.bfloat16)

    tb = _pick_tile(B, block_b)
    padB = _round_up(B, tb)
    if padB != B:
        drug = jnp.pad(drug, ((0, padB - B), (0, 0)))
        target = jnp.pad(target, ((0, padB - B), (0, 0)))

    args = (drug, target, params["wd"], params["bd"], params["wt"], params["bt"])
    try:
        out = _build_call(tb, padB, Dd, Dt, L, True, vmem_limit_bytes)(*args)
    except Exception:
        # jax version without BlockSpec(pipeline_mode=...) support: fall back to
        # default double-buffered weights (2x weight VMEM, otherwise identical).
        out = _build_call(tb, padB, Dd, Dt, L, False, vmem_limit_bytes)(*args)

    return out[:B, 0]   # .squeeze() semantics of the torch module


def init_params(key, *, drug_shape, target_shape, latent_dimension):
    """Weights stored transposed, (in, out), relative to torch Linear.weight.
    Matmul weights are kept in bf16 (native MXU path, halves weight DMA bytes);
    biases stay f32."""
    # TODO(synk): on v7x the weights could be stored fp8 + per-tensor scale.
    kd, kt, kbd, kbt = jax.random.split(key, 4)
    std_d = math.sqrt(2.0 / (drug_shape + latent_dimension))     # xavier_normal_
    std_t = math.sqrt(2.0 / (target_shape + latent_dimension))
    wd = (std_d * jax.random.normal(kd, (drug_shape, latent_dimension),
                                    dtype=jnp.float32)).astype(jnp.bfloat16)
    wt = (std_t * jax.random.normal(kt, (target_shape, latent_dimension),
                                    dtype=jnp.float32)).astype(jnp.bfloat16)
    bound_d = 1.0 / math.sqrt(drug_shape)                        # torch Linear bias init
    bound_t = 1.0 / math.sqrt(target_shape)
    bd = jax.random.uniform(kbd, (1, latent_dimension), jnp.float32,
                            -bound_d, bound_d)
    bt = jax.random.uniform(kbt, (1, latent_dimension), jnp.float32,
                            -bound_t, bound_t)
    return {"wd": wd, "bd": bd, "wt": wt, "bt": bt}


def _reference(drug, target, params):
    """Pure-JAX reference on the same bf16 matmul path (correctness check)."""
    dp = jnp.dot(drug.astype(jnp.bfloat16), params["wd"],
                 preferred_element_type=jnp.float32) + params["bd"]
    dp = jnp.maximum(dp, 0.0)
    tp = jnp.dot(target.astype(jnp.bfloat16), params["wt"],
                 preferred_element_type=jnp.float32) + params["bt"]
    tp = jnp.maximum(tp, 0.0)
    num = jnp.sum(dp * tp, axis=-1)
    denom = jnp.maximum(jnp.linalg.norm(dp, axis=-1) * jnp.linalg.norm(tp, axis=-1),
                        COS_EPS)
    return num / denom


if __name__ == "__main__":
    # Small, TPU-friendly shapes consistent with the module
    # (drug_shape / target_shape / latent scaled down from 2048/1024/1024).
    B = 8
    drug_shape, target_shape, latent_dimension = 256, 128, 128

    key = jax.random.PRNGKey(0)
    kx, ky, kp = jax.random.split(key, 3)
    drug = jax.random.normal(kx, (B, drug_shape), dtype=jnp.float32)
    target = jax.random.normal(ky, (B, target_shape), dtype=jnp.float32)

    params = init_params(kp, drug_shape=drug_shape, target_shape=target_shape,
                         latent_dimension=latent_dimension)

    out = simple_coembedding_classify(drug, target, params)
    out = jax.block_until_ready(out)

    assert out.shape == (B,), out.shape
    assert bool(jnp.all(jnp.isfinite(out)))
    assert bool(jnp.all(jnp.abs(out) <= 1.0 + 1e-3))   # cosine range

    ref = _reference(drug, target, params)
    assert bool(jnp.allclose(out, ref, atol=1e-3, rtol=1e-3)), (out, ref)

    # TODO(synk): regress() path (bmm inner product + ReLU) and the non-Cosine
    # distance metrics are not wired up; default forward (classify + Cosine) only.
    print("KERNEL_OK")
</pallas_src>

<mosaic_0001>
module attributes {stable_mosaic.version = 11 : i64} {
  func.func @coembed_cosine_kernel(%arg0: i32, %arg1: memref<8x256xbf16, #tpu.memory_space<vmem>>, %arg2: memref<8x128xbf16, #tpu.memory_space<vmem>>, %arg3: memref<256x128xbf16, #tpu.memory_space<vmem>>, %arg4: memref<1x128xf32, #tpu.memory_space<vmem>>, %arg5: memref<128x128xbf16, #tpu.memory_space<vmem>>, %arg6: memref<1x128xf32, #tpu.memory_space<vmem>>, %arg7: memref<8x1xf32, #tpu.memory_space<vmem>>) attributes {dimension_semantics = [#tpu.dimension_semantics<parallel>], iteration_bounds = array<i64: 1>, scalar_prefetch = 0 : i64, scratch_operands = 0 : i64, tpu.core_type = #tpu.core_type<tc>, window_params = [{transform_indices = @transform_0, window_bounds = array<i64: 8, 256>}, {transform_indices = @transform_1, window_bounds = array<i64: 8, 128>}, {pipeline_mode = #tpu.pipeline_mode<synchronous>, transform_indices = @transform_2, window_bounds = array<i64: 256, 128>}, {pipeline_mode = #tpu.pipeline_mode<synchronous>, transform_indices = @transform_3, window_bounds = array<i64: 1, 128>}, {pipeline_mode = #tpu.pipeline_mode<synchronous>, transform_indices = @transform_4, window_bounds = array<i64: 128, 128>}, {pipeline_mode = #tpu.pipeline_mode<synchronous>, transform_indices = @transform_5, window_bounds = array<i64: 1, 128>}, {transform_indices = @transform_6, window_bounds = array<i64: 8, 1>}]} {
    %c0 = arith.constant 0 : index
    %c0_0 = arith.constant 0 : index
    %0 = vector.load %arg1[%c0, %c0_0] : memref<8x256xbf16, #tpu.memory_space<vmem>>, vector<8x256xbf16>
    %c0_1 = arith.constant 0 : index
    %c0_2 = arith.constant 0 : index
    %1 = vector.load %arg3[%c0_1, %c0_2] : memref<256x128xbf16, #tpu.memory_space<vmem>>, vector<256x128xbf16>
    %cst = arith.constant dense<0.000000e+00> : vector<8x128xf32>
    %2 = tpu.matmul %0, %1, %cst {dimension_numbers = #tpu.dot_dimension_numbers<[1], [0], [0], [1], [0, 0, 1, 1], [], []>} : vector<8x256xbf16>, vector<256x128xbf16>, vector<8x128xf32> -> vector<8x128xf32>
    %c0_3 = arith.constant 0 : index
    %c0_4 = arith.constant 0 : index
    %3 = vector.load %arg4[%c0_3, %c0_4] : memref<1x128xf32, #tpu.memory_space<vmem>>, vector<1x128xf32>
    %4 = vector.broadcast %3 : vector<1x128xf32> to vector<8x128xf32>
    %5 = arith.addf %2, %4 : vector<8x128xf32>
    %cst_5 = arith.constant 0.000000e+00 : f32
    %6 = vector.broadcast %cst_5 : f32 to vector<8x128xf32>
    %7 = arith.maximumf %5, %6 : vector<8x128xf32>
    %c0_6 = arith.constant 0 : index
    %c0_7 = arith.constant 0 : index
    %8 = vector.load %arg2[%c0_6, %c0_7] : memref<8x128xbf16, #tpu.memory_space<vmem>>, vector<8x128xbf16>
    %c0_8 = arith.constant 0 : index
    %c0_9 = arith.constant 0 : index
    %9 = vector.load %arg5[%c0_8, %c0_9] : memref<128x128xbf16, #tpu.memory_space<vmem>>, vector<128x128xbf16>
    %cst_10 = arith.constant dense<0.000000e+00> : vector<8x128xf32>
    %10 = tpu.matmul %8, %9, %cst_10 {dimension_numbers = #tpu.dot_dimension_numbers<[1], [0], [0], [1], [0, 0, 1, 1], [], []>} : vector<8x128xbf16>, vector<128x128xbf16>, vector<8x128xf32> -> vector<8x128xf32>
    %c0_11 = arith.constant 0 : index
    %c0_12 = arith.constant 0 : index
    %11 = vector.load %arg6[%c0_11, %c0_12] : memref<1x128xf32, #tpu.memory_space<vmem>>, vector<1x128xf32>
    %12 = vector.broadcast %11 : vector<1x128xf32> to vector<8x128xf32>
    %13 = arith.addf %10, %12 : vector<8x128xf32>
    %cst_13 = arith.constant 0.000000e+00 : f32
    %14 = vector.broadcast %cst_13 : f32 to vector<8x128xf32>
    %15 = arith.maximumf %13, %14 : vector<8x128xf32>
    %16 = arith.mulf %7, %15 : vector<8x128xf32>
    %cst_14 = arith.constant dense<0.000000e+00> : vector<8xf32>
    %17 = vector.multi_reduction <add>, %16, %cst_14 [1] : vector<8x128xf32> to vector<8xf32>
    %18 = vector.shape_cast %17 : vector<8xf32> to vector<8x1xf32>
    %19 = arith.mulf %7, %7 : vector<8x128xf32>
    %cst_15 = arith.constant dense<0.000000e+00> : vector<8xf32>
    %20 = vector.multi_reduction <add>, %19, %cst_15 [1] : vector<8x128xf32> to vector<8xf32>
    %21 = vector.shape_cast %20 : vector<8xf32> to vector<8x1xf32>
    %22 = arith.mulf %15, %15 : vector<8x128xf32>
    %cst_16 = arith.constant dense<0.000000e+00> : vector<8xf32>
    %23 = vector.multi_reduction <add>, %22, %cst_16 [1] : vector<8x128xf32> to vector<8xf32>
    %24 = vector.shape_cast %23 : vector<8xf32> to vector<8x1xf32>
    %25 = arith.mulf %21, %24 : vector<8x1xf32>
    %cst_17 = arith.constant 1.000000e-16 : f32
    %26 = vector.broadcast %cst_17 : f32 to vector<8x1xf32>
    %27 = arith.maximumf %25, %26 : vector<8x1xf32>
    %28 = math.rsqrt %27 : vector<8x1xf32>
    %29 = arith.mulf %18, %28 : vector<8x1xf32>
    %c0_18 = arith.constant 0 : index
    %c0_19 = arith.constant 0 : index
    %30 = vector.load %arg7[%c0_18, %c0_19] : memref<8x1xf32, #tpu.memory_space<vmem>>, vector<8x1xf32>
    tpu.vector_store %arg7[%c0_18, %c0_19], %29 {strides = array<i32>} : memref<8x1xf32, #tpu.memory_space<vmem>>, vector<8x1xf32>,
    return
  }
  func.func @transform_0(%arg0: i32) -> (i32, i32) {
    %c0_i32 = arith.constant 0 : i32
    %c0_i32_0 = arith.constant 0 : i32
    return %arg0, %c0_i32 : i32, i32
  }
  func.func @transform_1(%arg0: i32) -> (i32, i32) {
    %c0_i32 = arith.constant 0 : i32
    %c0_i32_0 = arith.constant 0 : i32
    return %arg0, %c0_i32 : i32, i32
  }
  func.func @transform_2(%arg0: i32) -> (i32, i32) {
    %c0_i32 = arith.constant 0 : i32
    %c0_i32_0 = arith.constant 0 : i32
    %c0_i32_1 = arith.constant 0 : i32
    return %c0_i32, %c0_i32_0 : i32, i32
  }
  func.func @transform_3(%arg0: i32) -> (i32, i32) {
    %c0_i32 = arith.constant 0 : i32
    %c0_i32_0 = arith.constant 0 : i32
    %c0_i32_1 = arith.constant 0 : i32
    return %c0_i32, %c0_i32_0 : i32, i32
  }
  func.func @transform_4(%arg0: i32) -> (i32, i32) {
    %c0_i32 = arith.constant 0 : i32
    %c0_i32_0 = arith.constant 0 : i32
    %c0_i32_1 = arith.constant 0 : i32
    return %c0_i32, %c0_i32_0 : i32, i32
  }
  func.func @transform_5(%arg0: i32) -> (i32, i32) {
    %c0_i32 = arith.constant 0 : i32
    %c0_i32_0 = arith.constant 0 : i32
    %c0_i32_1 = arith.constant 0 : i32
    return %c0_i32, %c0_i32_0 : i32, i32
  }
  func.func @transform_6(%arg0: i32) -> (i32, i32) {
    %c0_i32 = arith.constant 0 : i32
    %c0_i32_0 = arith.constant 0 : i32
    return %arg0, %c0_i32 : i32, i32
  }
}

module attributes {stable_mosaic.version = 11 : i64} {
  func.func @coembed_cosine_kernel(%arg0: i32, %arg1: memref<8x256xbf16, #tpu.memory_space<vmem>>, %arg2: memref<8x128xbf16, #tpu.memory_space<vmem>>, %arg3: memref<256x128xbf16, #tpu.memory_space<vmem>>, %arg4: memref<1x128xf32, #tpu.memory_space<vmem>>, %arg5: memref<128x128xbf16, #tpu.memory_space<vmem>>, %arg6: memref<1x128xf32, #tpu.memory_space<vmem>>, %arg7: memref<8x1xf32, #tpu.memory_space<vmem>>) attributes {dimension_semantics = [#tpu.dimension_semantics<parallel>], iteration_bounds = array<i64: 1>, scalar_prefetch = 0 : i64, scratch_operands = 0 : i64, tpu.core_type = #tpu.core_type<tc>, window_params = [{transform_indices = @transform_0, window_bounds = array<i64: 8, 256>}, {transform_indices = @transform_1, window_bounds = array<i64: 8, 128>}, {pipeline_mode = #tpu.pipeline_mode<synchronous>, transform_indices = @transform_2, window_bounds = array<i64: 256, 128>}, {pipeline_mode = #tpu.pipeline_mode<synchronous>, transform_indices = @transform_3, window_bounds = array<i64: 1, 128>}, {pipeline_mode = #tpu.pipeline_mode<synchronous>, transform_indices = @transform_4, window_bounds = array<i64: 128, 128>}, {pipeline_mode = #tpu.pipeline_mode<synchronous>, transform_indices = @transform_5, window_bounds = array<i64: 1, 128>}, {transform_indices = @transform_6, window_bounds = array<i64: 8, 1>}]} {
    %c0 = arith.constant 0 : index
    %c0_0 = arith.constant 0 : index
    %0 = vector.load %arg1[%c0, %c0_0] : memref<8x256xbf16, #tpu.memory_space<vmem>>, vector<8x256xbf16>
    %c0_1 = arith.constant 0 : index
    %c0_2 = arith.constant 0 : index
    %1 = vector.load %arg3[%c0_1, %c0_2] : memref<256x128xbf16, #tpu.memory_space<vmem>>, vector<256x128xbf16>
    %cst = arith.constant dense<0.000000e+00> : vector<8x128xf32>
    %2 = tpu.matmul %0, %1, %cst {dimension_numbers = #tpu.dot_dimension_numbers<[1], [0], [0], [1], [0, 0, 1, 1], [], []>} : vector<8x256xbf16>, vector<256x128xbf16>, vector<8x128xf32> -> vector<8x128xf32>
    %c0_3 = arith.constant 0 : index
    %c0_4 = arith.constant 0 : index
    %3 = vector.load %arg4[%c0_3, %c0_4] : memref<1x128xf32, #tpu.memory_space<vmem>>, vector<1x128xf32>
    %4 = vector.broadcast %3 : vector<1x128xf32> to vector<8x128xf32>
    %5 = arith.addf %2, %4 : vector<8x128xf32>
    %cst_5 = arith.constant 0.000000e+00 : f32
    %6 = vector.broadcast %cst_5 : f32 to vector<8x128xf32>
    %7 = arith.maximumf %5, %6 : vector<8x128xf32>
    %c0_6 = arith.constant 0 : index
    %c0_7 = arith.constant 0 : index
    %8 = vector.load %arg2[%c0_6, %c0_7] : memref<8x128xbf16, #tpu.memory_space<vmem>>, vector<8x128xbf16>
    %c0_8 = arith.constant 0 : index
    %c0_9 = arith.constant 0 : index
    %9 = vector.load %arg5[%c0_8, %c0_9] : memref<128x128xbf16, #tpu.memory_space<vmem>>, vector<128x128xbf16>
    %cst_10 = arith.constant dense<0.000000e+00> : vector<8x128xf32>
    %10 = tpu.matmul %8, %9, %cst_10 {dimension_numbers = #tpu.dot_dimension_numbers<[1], [0], [0], [1], [0, 0, 1, 1], [], []>} : vector<8x128xbf16>, vector<128x128xbf16>, vector<8x128xf32> -> vector<8x128xf32>
    %c0_11 = arith.constant 0 : index
    %c0_12 = arith.constant 0 : index
    %11 = vector.load %arg6[%c0_11, %c0_12] : memref<1x128xf32, #tpu.memory_space<vmem>>, vector<1x128xf32>
    %12 = vector.broadcast %11 : vector<1x128xf32> to vector<8x128xf32>
    %13 = arith.addf %10, %12 : vector<8x128xf32>
    %cst_13 = arith.constant 0.000000e+00 : f32
    %14 = vector.broadcast %cst_13 : f32 to vector<8x128xf32>
    %15 = arith.maximumf %13, %14 : vector<8x128xf32>
    %16 = arith.mulf %7, %15 : vector<8x128xf32>
    %cst_14 = arith.constant dense<0.000000e+00> : vector<8xf32>
    %17 = vector.multi_reduction <add>, %16, %cst_14 [1] : vector<8x128xf32> to vector<8xf32>
    %18 = vector.shape_cast %17 : vector<8xf32> to vector<8x1xf32>
    %19 = arith.mulf %7, %7 : vector<8x128xf32>
    %cst_15 = arith.constant dense<0.000000e+00> : vector<8xf32>
    %20 = vector.multi_reduction <add>, %19, %cst_15 [1] : vector<8x128xf32> to vector<8xf32>
    %21 = vector.shape_cast %20 : vector<8xf32> to vector<8x1xf32>
    %22 = arith.mulf %15, %15 : vector<8x128xf32>
    %cst_16 = arith.constant dense<0.000000e+00> : vector<8xf32>
    %23 = vector.multi_reduction <add>, %22, %cst_16 [1] : vector<8x128xf32> to vector<8xf32>
    %24 = vector.shape_cast %23 : vector<8xf32> to vector<8x1xf32>
    %25 = arith.mulf %21, %24 : vector<8x1xf32>
    %cst_17 = arith.constant 1.000000e-16 : f32
    %26 = vector.broadcast %cst_17 : f32 to vector<8x1xf32>
    %27 = arith.maximumf %25, %26 : vector<8x1xf32>
    %28 = math.rsqrt %27 : vector<8x1xf32>
    %29 = arith.mulf %18, %28 : vector<8x1xf32>
    %c0_18 = arith.constant 0 : index
    %c0_19 = arith.constant 0 : index
    %30 = vector.load %arg7[%c0_18, %c0_19] : memref<8x1xf32, #tpu.memory_space<vmem>>, vector<8x1xf32>
    tpu.vector_store %arg7[%c0_18, %c0_19], %29 {strides = array<i32>} : memref<8x1xf32, #tpu.memory_space<vmem>>, vector<8x1xf32>,
    return
  }
  func.func @transform_0(%arg0: i32) -> (i32, i32) {
    %c0_i32 = arith.constant 0 : i32
    %c0_i32_0 = arith.constant 0 : i32
    return %arg0, %c0_i32 : i32, i32
  }
  func.func @transform_1(%arg0: i32) -> (i32, i32) {
    %c0_i32 = arith.constant 0 : i32
    %c0_i32_0 = arith.constant 0 : i32
    return %arg0, %c0_i32 : i32, i32
  }
  func.func @transform_2(%arg0: i32) -> (i32, i32) {
    %c0_i32 = arith.constant 0 : i32
    %c0_i32_0 = arith.constant 0 : i32
    %c0_i32_1 = arith.constant 0 : i32
    return %c0_i32, %c0_i32_0 : i32, i32
  }
  func.func @transform_3(%arg0: i32) -> (i32, i32) {
    %c0_i32 = arith.constant 0 : i32
    %c0_i32_0 = arith.constant 0 : i32
    %c0_i32_1 = arith.constant 0 : i32
    return %c0_i32, %c0_i32_0 : i32, i32
  }
  func.func @transform_4(%arg0: i32) -> (i32, i32) {
    %c0_i32 = arith.constant 0 : i32
    %c0_i32_0 = arith.constant 0 : i32
    %c0_i32_1 = arith.constant 0 : i32
    return %c0_i32, %c0_i32_0 : i32, i32
  }
  func.func @transform_5(%arg0: i32) -> (i32, i32) {
    %c0_i32 = arith.constant 0 : i32
    %c0_i32_0 = arith.constant 0 : i32
    %c0_i32_1 = arith.constant 0 : i32
    return %c0_i32, %c0_i32_0 : i32, i32
  }
  func.func @transform_6(%arg0: i32) -> (i32, i32) {
    %c0_i32 = arith.constant 0 : i32
    %c0_i32_0 = arith.constant 0 : i32
    return %arg0, %c0_i32 : i32, i32
  }
}

</mosaic_0001>

<llo_original>
// kernel: tpu_custom_call.1
$region0: #{tpu_custom_call.1}
  #allocation0 [shape = 'u32[]', space=smem, size = 0x4, offset = 0x4, fixed_abs, tag = 'smem constant byte address 0x4 - core index']
  #allocation1 [shape = 'u32[144,128]{1,0:T(1,128)}', space=vmem, size = 0x12000, scoped, tag = 'internal scratch']
  %s0 = inlined_call_operand.hbm [shape: bf16[8,256], index: 0, kind: input, shape index: {}]
  %s1 = inlined_call_operand.hbm [shape: bf16[8,128], index: 1, kind: input, shape index: {}]
  %s2 = inlined_call_operand.hbm [shape: bf16[256,128], index: 2, kind: input, shape index: {}]
  %s3 = inlined_call_operand.vmem [shape: f32[1,128], index: 3, kind: input, shape index: {}]
  %s4 = inlined_call_operand.hbm [shape: bf16[128,128], index: 4, kind: input, shape index: {}]
  %s5 = inlined_call_operand.vmem [shape: f32[1,128], index: 5, kind: input, shape index: {}]
  %s6 = inlined_call_operand.vmem [shape: f32[8,1], index: 6, kind: output, shape index: {}]
  %s7 = sld [smem:[#allocation0]]
  $region50: #{tpu_custom_call.1} parent=0
    _
  %s9 = ssub.s32 1, %s7
  %s10 = scalar_select 0, %s9, %s7
  $region1: #{tpu_custom_call.1} parent=0
    #allocation2 [shape = 'u8[4096]{0}', space=vmem, size = 0x1000, scoped, tag = 'input window, operand 0, single buffered']
    #allocation3 [shape = 's32[1]{0}', space=sflag, size = 0x4, scoped, tag = 'scoped memory for tpu_custom_call.1']
    #allocation4 [shape = 'u8[2048]{0}', space=vmem, size = 0x800, scoped, tag = 'input window, operand 1, single buffered']
    #allocation5 [shape = 's32[1]{0}', space=sflag, size = 0x4, scoped, tag = 'scoped memory for tpu_custom_call.1']
    #allocation6 [shape = 'u8[65536]{0}', space=vmem, size = 0x10000, scoped, tag = 'input window, operand 2, single buffered']
    #allocation7 [shape = 'u8[32768]{0}', space=vmem, size = 0x8000, scoped, tag = 'input window, operand 4, single buffered']
    #allocation8 [shape = 's32[1]{0}', space=sflag, size = 0x4, scoped, tag = 'scoped memory for tpu_custom_call.1']
    %11 = vsyncpa [#allocation3], 0
    %12 = vsyncpa [#allocation5], 0
    %13 = vsyncpa [#allocation8], 0
    // Predicated region
    $region2: #{tpu_custom_call.1} parent=1 // pred_check
      _
    $region3: #{tpu_custom_call.1} parent=1 // pred_check_branch
      %15 = sbr.rel (0) target = $region5
    $region4: #{tpu_custom_call.1} parent=1 // pred_region
      %s17 = ssub.s32 128, 128
      %18 = vsyncadd [#allocation3], %s17
      %s20 = sshll.u32 [#allocation2], 4
      %s21 = int_to_ptr.vmem [resolvable:$true] %s20
      %23 = dma.hbm_to_vmem [thread:$0]  %s0, 128, %s21, [#allocation3]
    $region5: #{tpu_custom_call.1} parent=1 // pred_fallthru
      _
    // Predicated region
    $region6: #{tpu_custom_call.1} parent=1 // pred_check
      _
    $region7: #{tpu_custom_call.1} parent=1 // pred_check_branch
      %25 = sbr.rel (0) target = $region9
    $region8: #{tpu_custom_call.1} parent=1 // pred_region
      %s27 = ssub.s32 64, 64
      %28 = vsyncadd [#allocation5], %s27
      %s30 = sshll.u32 [#allocation4], 4
      %s31 = int_to_ptr.vmem [resolvable:$true] %s30
      %33 = dma.hbm_to_vmem [thread:$0]  %s1, 64, %s31, [#allocation5]
    $region9: #{tpu_custom_call.1} parent=1 // pred_fallthru
      _
    // Predicated region
    $region10: #{tpu_custom_call.1} parent=1 // pred_check
      _
    $region11: #{tpu_custom_call.1} parent=1 // pred_check_branch
      %35 = sbr.rel (0) target = $region13
    $region12: #{tpu_custom_call.1} parent=1 // pred_region
      %s37 = ssub.s32 2048, 2048
      %38 = vsyncadd [#allocation5], %s37
      %s39 = sshll.u32 [#allocation6], 4
      %s40 = int_to_ptr.vmem [resolvable:$true] %s39
      %45 = dma.hbm_to_vmem [thread:$0]  %s2, 2048, %s40, [#allocation5], 64, 64, 4
    $region13: #{tpu_custom_call.1} parent=1 // pred_fallthru
      _
    // Predicated region
    $region14: #{tpu_custom_call.1} parent=1 // pred_check
      _
    $region15: #{tpu_custom_call.1} parent=1 // pred_check_branch
      %47 = sbr.rel (0) target = $region17
    $region16: #{tpu_custom_call.1} parent=1 // pred_region
      _
    $region17: #{tpu_custom_call.1} parent=1 // pred_fallthru
      _
    // Predicated region
    $region18: #{tpu_custom_call.1} parent=1 // pred_check
      _
    $region19: #{tpu_custom_call.1} parent=1 // pred_check_branch
      %49 = sbr.rel (0) target = $region21
    $region20: #{tpu_custom_call.1} parent=1 // pred_region
      %s51 = ssub.s32 1024, 1024
      %52 = vsyncadd [#allocation8], %s51
      %s53 = sshll.u32 [#allocation7], 4
      %s54 = int_to_ptr.vmem [resolvable:$true] %s53
      %59 = dma.hbm_to_vmem [thread:$0]  %s4, 1024, %s54, [#allocation8], 64, 64, 4
    $region21: #{tpu_custom_call.1} parent=1 // pred_fallthru
      _
    // Predicated region
    $region22: #{tpu_custom_call.1} parent=1 // pred_check
      _
    $region23: #{tpu_custom_call.1} parent=1 // pred_check_branch
      %61 = sbr.rel (0) target = $region25
    $region24: #{tpu_custom_call.1} parent=1 // pred_region
      _
    $region25: #{tpu_custom_call.1} parent=1 // pred_fallthru
      _
    // Predicated region
    $region26: #{tpu_custom_call.1} parent=1 // pred_check
      _
    $region27: #{tpu_custom_call.1} parent=1 // pred_check_branch
      %63 = sbr.rel (0) target = $region29
    $region28: #{tpu_custom_call.1} parent=1 // pred_region
      %64 = dma.done [#allocation3], 128
    $region29: #{tpu_custom_call.1} parent=1 // pred_fallthru
      _
    // Predicated region
    $region30: #{tpu_custom_call.1} parent=1 // pred_check
      _
    $region31: #{tpu_custom_call.1} parent=1 // pred_check_branch
      %66 = sbr.rel (0) target = $region33
    $region32: #{tpu_custom_call.1} parent=1 // pred_region
      %67 = dma.done [#allocation5], 64
    $region33: #{tpu_custom_call.1} parent=1 // pred_fallthru
      _
    // Predicated region
    $region34: #{tpu_custom_call.1} parent=1 // pred_check
      _
    $region35: #{tpu_custom_call.1} parent=1 // pred_check_branch
      %69 = sbr.rel (0) target = $region37
    $region36: #{tpu_custom_call.1} parent=1 // pred_region
      %70 = dma.done [#allocation5], 2048
    $region37: #{tpu_custom_call.1} parent=1 // pred_fallthru
      _
    // Predicated region
    $region38: #{tpu_custom_call.1} parent=1 // pred_check
      _
    $region39: #{tpu_custom_call.1} parent=1 // pred_check_branch
      %72 = sbr.rel (0) target = $region41
    $region40: #{tpu_custom_call.1} parent=1 // pred_region
      %73 = dma.done [#allocation8], 1024
    $region41: #{tpu_custom_call.1} parent=1 // pred_fallthru
      _
    %v75 = vld [vmem:[#allocation2] sm:$0xff]
    %v76 = vld [vmem:[#allocation6] sm:$0xf]
    %v77 = vld [vmem:[#allocation6 + $0x4] sm:$0xf]
    %v78 = vld [vmem:[#allocation6 + $0x8] sm:$0xf]
    %v79 = vld [vmem:[#allocation6 + $0xc] sm:$0xf]
    %v80 = vld [vmem:[#allocation6 + $0x10] sm:$0xf]
    %v81 = vld [vmem:[#allocation6 + $0x14] sm:$0xf]
    %v82 = vld [vmem:[#allocation6 + $0x18] sm:$0xf]
    %v83 = vld [vmem:[#allocation6 + $0x1c] sm:$0xf]
    %v84 = vld [vmem:[#allocation6 + $0x20] sm:$0xf]
    %v85 = vld [vmem:[#allocation6 + $0x24] sm:$0xf]
    %v86 = vld [vmem:[#allocation6 + $0x28] sm:$0xf]
    %v87 = vld [vmem:[#allocation6 + $0x2c] sm:$0xf]
    %v88 = vld [vmem:[#allocation6 + $0x30] sm:$0xf]
    %v89 = vld [vmem:[#allocation6 + $0x34] sm:$0xf]
    %v90 = vld [vmem:[#allocation6 + $0x38] sm:$0xf]
    %v91 = vld [vmem:[#allocation6 + $0x3c] sm:$0xf]
    %v92 = vld [vmem:[#allocation6 + $0x40] sm:$0xf]
    %v93 = vld [vmem:[#allocation6 + $0x44] sm:$0xf]
    %v94 = vld [vmem:[#allocation6 + $0x48] sm:$0xf]
    %v95 = vld [vmem:[#allocation6 + $0x4c] sm:$0xf]
    %v96 = vld [vmem:[#allocation6 + $0x50] sm:$0xf]
    %v97 = vld [vmem:[#allocation6 + $0x54] sm:$0xf]
    %v98 = vld [vmem:[#allocation6 + $0x58] sm:$0xf]
    %v99 = vld [vmem:[#allocation6 + $0x5c] sm:$0xf]
    %v100 = vld [vmem:[#allocation6 + $0x60] sm:$0xf]
    %v101 = vld [vmem:[#allocation6 + $0x64] sm:$0xf]
    %v102 = vld [vmem:[#allocation6 + $0x68] sm:$0xf]
    %v103 = vld [vmem:[#allocation6 + $0x6c] sm:$0xf]
    %v104 = vld [vmem:[#allocation6 + $0x70] sm:$0xf]
    %v105 = vld [vmem:[#allocation6 + $0x74] sm:$0xf]
    %v106 = vld [vmem:[#allocation6 + $0x78] sm:$0xf]
    %v107 = vld [vmem:[#allocation6 + $0x7c] sm:$0xf]
    %v108 = vld [vmem:[%s3] sm:$0x1]
    %v110 = vlaneseq
    %v111 = vshrl.u32 %v110, 7
    %v112 = vsub.s32 0, %v111
    %v113 = vrot.slane %v108, %v112
    %v116 = vunpack.c.l.b16 %v75
    %v117 = vunpack.c.h.b16 %v75
    %v118 = vpack.c.b16 %v116, %v116
    %v119 = vpack.c.b16 %v117, %v117
    %v154 = vunpack.c.l.b16 %v76
    %v155 = vunpack.c.l.b16 %v77
    %v156 = vunpack.c.l.b16 %v78
    %v157 = vunpack.c.l.b16 %v79
    %v158 = vunpack.c.l.b16 %v80
    %v159 = vunpack.c.l.b16 %v81
    %v160 = vunpack.c.l.b16 %v82
    %v161 = vunpack.c.l.b16 %v83
    %v162 = vunpack.c.l.b16 %v84
    %v163 = vunpack.c.l.b16 %v85
    %v164 = vunpack.c.l.b16 %v86
    %v165 = vunpack.c.l.b16 %v87
    %v166 = vunpack.c.l.b16 %v88
    %v167 = vunpack.c.l.b16 %v89
    %v168 = vunpack.c.l.b16 %v90
    %v169 = vunpack.c.l.b16 %v91
    %v170 = vunpack.c.l.b16 %v92
    %v171 = vunpack.c.l.b16 %v93
    %v172 = vunpack.c.l.b16 %v94
    %v173 = vunpack.c.l.b16 %v95
    %v174 = vunpack.c.l.b16 %v96
    %v175 = vunpack.c.l.b16 %v97
    %v176 = vunpack.c.l.b16 %v98
    %v177 = vunpack.c.l.b16 %v99
    %v178 = vunpack.c.l.b16 %v100
    %v179 = vunpack.c.l.b16 %v101
    %v180 = vunpack.c.l.b16 %v102
    %v181 = vunpack.c.l.b16 %v103
    %v182 = vunpack.c.l.b16 %v104
    %v183 = vunpack.c.l.b16 %v105
    %v184 = vunpack.c.l.b16 %v106
    %v185 = vunpack.c.l.b16 %v107
    %v186 = vpack.c.b16 %v155, %v154
    %v187 = vpack.c.b16 %v157, %v156
    %v188 = vpack.c.b16 %v159, %v158
    %v189 = vpack.c.b16 %v161, %v160
    %v190 = vpack.c.b16 %v163, %v162
    %v191 = vpack.c.b16 %v165, %v164
    %v192 = vpack.c.b16 %v167, %v166
    %v193 = vpack.c.b16 %v169, %v168
    %v194 = vpack.c.b16 %v171, %v170
    %v195 = vpack.c.b16 %v173, %v172
    %v196 = vpack.c.b16 %v175, %v174
    %v197 = vpack.c.b16 %v177, %v176
    %v198 = vpack.c.b16 %v179, %v178
    %v199 = vpack.c.b16 %v181, %v180
    %v200 = vpack.c.b16 %v183, %v182
    %v201 = vpack.c.b16 %v185, %v184
    %218 = vmatprep.subr.bf16.mxu0 0
    %219 = vmatpush1.bf16.msra.mxu0 %v186
    %220 = vmatprep.subr.bf16.mxu0 0
    %221 = vmatpush1.bf16.msra.mxu0 %v187
    %222 = vmatprep.subr.bf16.mxu0 0
    %223 = vmatpush1.bf16.msra.mxu0 %v188
    %224 = vmatprep.subr.bf16.mxu0 0
    %225 = vmatpush1.bf16.msra.mxu0 %v189
    %226 = vmatprep.subr.bf16.mxu0 0
    %227 = vmatpush1.bf16.msra.mxu0 %v190
    %228 = vmatprep.subr.bf16.mxu0 0
    %229 = vmatpush1.bf16.msra.mxu0 %v191
    %230 = vmatprep.subr.bf16.mxu0 0
    %231 = vmatpush1.bf16.msra.mxu0 %v192
    %232 = vmatprep.subr.bf16.mxu0 0
    %233 = vmatpush1.bf16.msra.mxu0 %v193
    %234 = vmatprep.subr.bf16.mxu0 0
    %235 = vmatpush1.bf16.msra.mxu0 %v194
    %236 = vmatprep.subr.bf16.mxu0 0
    %237 = vmatpush1.bf16.msra.mxu0 %v195
    %238 = vmatprep.subr.bf16.mxu0 0
    %239 = vmatpush1.bf16.msra.mxu0 %v196
    %240 = vmatprep.subr.bf16.mxu0 0
    %241 = vmatpush1.bf16.msra.mxu0 %v197
    %242 = vmatprep.subr.bf16.mxu0 0
    %243 = vmatpush1.bf16.msra.mxu0 %v198
    %244 = vmatprep.subr.bf16.mxu0 0
    %245 = vmatpush1.bf16.msra.mxu0 %v199
    %246 = vmatprep.subr.bf16.mxu0 0
    %247 = vmatpush1.bf16.msra.mxu0 %v200
    %248 = vmatprep.subr.bf16.mxu0 0
    %249 = vmatpush1.bf16.msra.mxu0 %v201
    %250 = vmatprep.mubr.bf16.mxu0 %v119
    %251 = vmatmul.mubr.bf16.gmra.mrb[0].mxu0 %v118
    %v252 = vpop.f32.mrb[0].mxu0
    %v253 = vadd.f32 %v113, %v252
    %v254 = vpop.f32.mrb[0].mxu0
    %v255 = vpop.f32.mrb[0].mxu0
    %v256 = vpop.f32.mrb[0].mxu0
    %257 = vdwg.mxu0
    %v258 = vmax.f32 %v253, 0.0
    %v259 = vld [vmem:[#allocation4] sm:$0xf]
    %v260 = vld [vmem:[#allocation7] sm:$0xf]
    %v261 = vld [vmem:[#allocation7 + $0x4] sm:$0xf]
    %v262 = vld [vmem:[#allocation7 + $0x8] sm:$0xf]
    %v263 = vld [vmem:[#allocation7 + $0xc] sm:$0xf]
    %v264 = vld [vmem:[#allocation7 + $0x10] sm:$0xf]
    %v265 = vld [vmem:[#allocation7 + $0x14] sm:$0xf]
    %v266 = vld [vmem:[#allocation7 + $0x18] sm:$0xf]
    %v267 = vld [vmem:[#allocation7 + $0x1c] sm:$0xf]
    %v268 = vld [vmem:[#allocation7 + $0x20] sm:$0xf]
    %v269 = vld [vmem:[#allocation7 + $0x24] sm:$0xf]
    %v270 = vld [vmem:[#allocation7 + $0x28] sm:$0xf]
    %v271 = vld [vmem:[#allocation7 + $0x2c] sm:$0xf]
    %v272 = vld [vmem:[#allocation7 + $0x30] sm:$0xf]
    %v273 = vld [vmem:[#allocation7 + $0x34] sm:$0xf]
    %v274 = vld [vmem:[#allocation7 + $0x38] sm:$0xf]
    %v275 = vld [vmem:[#allocation7 + $0x3c] sm:$0xf]
    %v276 = vld [vmem:[%s5] sm:$0x1]
    %v278 = vlaneseq
    %v279 = vshrl.u32 %v278, 7
    %v280 = vsub.s32 0, %v279
    %v281 = vrot.slane %v276, %v280
    %v299 = vunpack.c.l.b16 %v260
    %v300 = vunpack.c.l.b16 %v261
    %v301 = vunpack.c.l.b16 %v262
    %v302 = vunpack.c.l.b16 %v263
    %v303 = vunpack.c.l.b16 %v264
    %v304 = vunpack.c.l.b16 %v265
    %v305 = vunpack.c.l.b16 %v266
    %v306 = vunpack.c.l.b16 %v267
    %v307 = vunpack.c.l.b16 %v268
    %v308 = vunpack.c.l.b16 %v269
    %v309 = vunpack.c.l.b16 %v270
    %v310 = vunpack.c.l.b16 %v271
    %v311 = vunpack.c.l.b16 %v272
    %v312 = vunpack.c.l.b16 %v273
    %v313 = vunpack.c.l.b16 %v274
    %v314 = vunpack.c.l.b16 %v275
    %v315 = vpack.c.b16 %v300, %v299
    %v316 = vpack.c.b16 %v302, %v301
    %v317 = vpack.c.b16 %v304, %v303
    %v318 = vpack.c.b16 %v306, %v305
    %v319 = vpack.c.b16 %v308, %v307
    %v320 = vpack.c.b16 %v310, %v309
    %v321 = vpack.c.b16 %v312, %v311
    %v322 = vpack.c.b16 %v314, %v313
    %331 = vmatprep.subr.bf16.mxu0 0
    %332 = vmatpush1.bf16.msra.mxu0 %v315
    %333 = vmatprep.subr.bf16.mxu0 0
    %334 = vmatpush1.bf16.msra.mxu0 %v316
    %335 = vmatprep.subr.bf16.mxu0 0
    %336 = vmatpush1.bf16.msra.mxu0 %v317
    %337 = vmatprep.subr.bf16.mxu0 0
    %338 = vmatpush1.bf16.msra.mxu0 %v318
    %339 = vmatprep.subr.bf16.mxu0 0
    %340 = vmatpush1.bf16.msra.mxu0 %v319
    %341 = vmatprep.subr.bf16.mxu0 0
    %342 = vmatpush1.bf16.msra.mxu0 %v320
    %343 = vmatprep.subr.bf16.mxu0 0
    %344 = vmatpush1.bf16.msra.mxu0 %v321
    %345 = vmatprep.subr.bf16.mxu0 0
    %346 = vmatpush1.bf16.msra.mxu0 %v322
    %347 = vmatprep.subr.bf16.mxu0 0
    %348 = vmatpush1.bf16.msra.mxu0 0
    %349 = vmatprep.subr.bf16.mxu0 0
    %350 = vmatpush1.bf16.msra.mxu0 0
    %351 = vmatprep.subr.bf16.mxu0 0
    %352 = vmatpush1.bf16.msra.mxu0 0
    %353 = vmatprep.subr.bf16.mxu0 0
    %354 = vmatpush1.bf16.msra.mxu0 0
    %355 = vmatprep.subr.bf16.mxu0 0
    %356 = vmatpush1.bf16.msra.mxu0 0
    %357 = vmatprep.subr.bf16.mxu0 0
    %358 = vmatpush1.bf16.msra.mxu0 0
    %359 = vmatprep.subr.bf16.mxu0 0
    %360 = vmatpush1.bf16.msra.mxu0 0
    %361 = vmatprep.subr.bf16.mxu0 0
    %362 = vmatpush1.bf16.msra.mxu0 0
    %363 = vmatprep.mubr.bf16.mxu0 0
    %364 = vmatmul.mubr.bf16.gmra.mrb[0].mxu0 %v259
    %v365 = vpop.f32.mrb[0].mxu0
    %v366 = vadd.f32 %v281, %v365
    %v367 = vpop.f32.mrb[0].mxu0
    %v368 = vpop.f32.mrb[0].mxu0
    %v369 = vpop.f32.mrb[0].mxu0
    %370 = vdwg.mxu0
    %v371 = vmax.f32 %v366, 0.0
    %v372 = vmul.f32 %v258, %v371
    %373 = vadd.xlane.f32.xlu0 %v372
    %v374 = vpop.xlane.xlu0 %373
    %v375 = vmul.f32 %v258, %v258
    %376 = vadd.xlane.f32.xlu0 %v375
    %v377 = vpop.xlane.xlu0 %376
    %v378 = vmul.f32 %v371, %v371
    %379 = vadd.xlane.f32.xlu0 %v378
    %v380 = vpop.xlane.xlu0 %379
    %v381 = vmul.f32 %v377, %v380
    %v382 = vmax.f32 %v381, 1e-16
    %v383 = vrsqrt.pop %v382
    %v384 = vmul.f32 %v374, %v383
    %vm385 = vcmask 7168
    %386 = vst.msk [vmem:[%s6] sm:$0xff] %vm385, %v384
    // Predicated region
    $region42: #{tpu_custom_call.1} parent=1 // pred_check
      _
    $region43: #{tpu_custom_call.1} parent=1 // pred_check_branch
      %388 = sbr.rel (0) target = $region45
    $region44: #{tpu_custom_call.1} parent=1 // pred_region
      _
    $region45: #{tpu_custom_call.1} parent=1 // pred_fallthru
      _
    // Predicated region
    $region46: #{tpu_custom_call.1} parent=1 // pred_check
      _
    $region47: #{tpu_custom_call.1} parent=1 // pred_check_branch
      %390 = sbr.rel (0) target = $region49
    $region48: #{tpu_custom_call.1} parent=1 // pred_region
      _
    $region49: #{tpu_custom_call.1} parent=1 // pred_fallthru
      _
    %391 = vsyncpa [#allocation3], 1
    %392 = vsyncpa [#allocation5], 1
    %393 = vsyncpa [#allocation8], 1

// kernel: tpu_custom_call.1
$region0: #{tpu_custom_call.1}
  #allocation0 [shape = 'u32[]', space=smem, size = 0x4, offset = 0x4, fixed_abs, tag = 'smem constant byte address 0x4 - core index']
  #allocation1 [shape = 'u32[144,128]{1,0:T(1,128)}', space=vmem, size = 0x12000, scoped, tag = 'internal scratch']
  %s0 = inlined_call_operand.hbm [shape: bf16[8,256], index: 0, kind: input, shape index: {}]
  %s1 = inlined_call_operand.hbm [shape: bf16[8,128], index: 1, kind: input, shape index: {}]
  %s2 = inlined_call_operand.hbm [shape: bf16[256,128], index: 2, kind: input, shape index: {}]
  %s3 = inlined_call_operand.vmem [shape: f32[1,128], index: 3, kind: input, shape index: {}]
  %s4 = inlined_call_operand.hbm [shape: bf16[128,128], index: 4, kind: input, shape index: {}]
  %s5 = inlined_call_operand.vmem [shape: f32[1,128], index: 5, kind: input, shape index: {}]
  %s6 = inlined_call_operand.vmem [shape: f32[8,1], index: 6, kind: output, shape index: {}]
  %s7 = sld [smem:[#allocation0]]
  $region50: #{tpu_custom_call.1} parent=0
    _
  %s9 = ssub.s32 1, %s7
  %s10 = scalar_select 0, %s9, %s7
  $region1: #{tpu_custom_call.1} parent=0
    #allocation2 [shape = 'u8[4096]{0}', space=vmem, size = 0x1000, scoped, tag = 'input window, operand 0, single buffered']
    #allocation3 [shape = 's32[1]{0}', space=sflag, size = 0x4, scoped, tag = 'scoped memory for tpu_custom_call.1']
    #allocation4 [shape = 'u8[2048]{0}', space=vmem, size = 0x800, scoped, tag = 'input window, operand 1, single buffered']
    #allocation5 [shape = 's32[1]{0}', space=sflag, size = 0x4, scoped, tag = 'scoped memory for tpu_custom_call.1']
    #allocation6 [shape = 'u8[65536]{0}', space=vmem, size = 0x10000, scoped, tag = 'input window, operand 2, single buffered']
    #allocation7 [shape = 'u8[32768]{0}', space=vmem, size = 0x8000, scoped, tag = 'input window, operand 4, single buffered']
    #allocation8 [shape = 's32[1]{0}', space=sflag, size = 0x4, scoped, tag = 'scoped memory for tpu_custom_call.1']
    %11 = vsyncpa [#allocation3], 0
    %12 = vsyncpa [#allocation5], 0
    %13 = vsyncpa [#allocation8], 0
    // Predicated region
    $region2: #{tpu_custom_call.1} parent=1 // pred_check
      _
    $region3: #{tpu_custom_call.1} parent=1 // pred_check_branch
      %15 = sbr.rel (0) target = $region5
    $region4: #{tpu_custom_call.1} parent=1 // pred_region
      %s17 = ssub.s32 128, 128
      %18 = vsyncadd [#allocation3], %s17
      %s20 = sshll.u32 [#allocation2], 4
      %s21 = int_to_ptr.vmem [resolvable:$true] %s20
      %23 = dma.hbm_to_vmem [thread:$0]  %s0, 128, %s21, [#allocation3]
    $region5: #{tpu_custom_call.1} parent=1 // pred_fallthru
      _
    // Predicated region
    $region6: #{tpu_custom_call.1} parent=1 // pred_check
      _
    $region7: #{tpu_custom_call.1} parent=1 // pred_check_branch
      %25 = sbr.rel (0) target = $region9
    $region8: #{tpu_custom_call.1} parent=1 // pred_region
      %s27 = ssub.s32 64, 64
      %28 = vsyncadd [#allocation5], %s27
      %s30 = sshll.u32 [#allocation4], 4
      %s31 = int_to_ptr.vmem [resolvable:$true] %s30
      %33 = dma.hbm_to_vmem [thread:$0]  %s1, 64, %s31, [#allocation5]
    $region9: #{tpu_custom_call.1} parent=1 // pred_fallthru
      _
    // Predicated region
    $region10: #{tpu_custom_call.1} parent=1 // pred_check
      _
    $region11: #{tpu_custom_call.1} parent=1 // pred_check_branch
      %35 = sbr.rel (0) target = $region13
    $region12: #{tpu_custom_call.1} parent=1 // pred_region
      %s37 = ssub.s32 2048, 2048
      %38 = vsyncadd [#allocation5], %s37
      %s39 = sshll.u32 [#allocation6], 4
      %s40 = int_to_ptr.vmem [resolvable:$true] %s39
      %45 = dma.hbm_to_vmem [thread:$0]  %s2, 2048, %s40, [#allocation5], 64, 64, 4
    $region13: #{tpu_custom_call.1} parent=1 // pred_fallthru
      _
    // Predicated region
    $region14: #{tpu_custom_call.1} parent=1 // pred_check
      _
    $region15: #{tpu_custom_call.1} parent=1 // pred_check_branch
      %47 = sbr.rel (0) target = $region17
    $region16: #{tpu_custom_call.1} parent=1 // pred_region
      _
    $region17: #{tpu_custom_call.1} parent=1 // pred_fallthru
      _
    // Predicated region
    $region18: #{tpu_custom_call.1} parent=1 // pred_check
      _
    $region19: #{tpu_custom_call.1} parent=1 // pred_check_branch
      %49 = sbr.rel (0) target = $region21
    $region20: #{tpu_custom_call.1} parent=1 // pred_region
      %s51 = ssub.s32 1024, 1024
      %52 = vsyncadd [#allocation8], %s51
      %s53 = sshll.u32 [#allocation7], 4
      %s54 = int_to_ptr.vmem [resolvable:$true] %s53
      %59 = dma.hbm_to_vmem [thread:$0]  %s4, 1024, %s54, [#allocation8], 64, 64, 4
    $region21: #{tpu_custom_call.1} parent=1 // pred_fallthru
      _
    // Predicated region
    $region22: #{tpu_custom_call.1} parent=1 // pred_check
      _
    $region23: #{tpu_custom_call.1} parent=1 // pred_check_branch
      %61 = sbr.rel (0) target = $region25
    $region24: #{tpu_custom_call.1} parent=1 // pred_region
      _
    $region25: #{tpu_custom_call.1} parent=1 // pred_fallthru
      _
    // Predicated region
    $region26: #{tpu_custom_call.1} parent=1 // pred_check
      _
    $region27: #{tpu_custom_call.1} parent=1 // pred_check_branch
      %63 = sbr.rel (0) target = $region29
    $region28: #{tpu_custom_call.1} parent=1 // pred_region
      %64 = dma.done [#allocation3], 128
    $region29: #{tpu_custom_call.1} parent=1 // pred_fallthru
      _
    // Predicated region
    $region30: #{tpu_custom_call.1} parent=1 // pred_check
      _
    $region31: #{tpu_custom_call.1} parent=1 // pred_check_branch
      %66 = sbr.rel (0) target = $region33
    $region32: #{tpu_custom_call.1} parent=1 // pred_region
      %67 = dma.done [#allocation5], 64
    $region33: #{tpu_custom_call.1} parent=1 // pred_fallthru
      _
    // Predicated region
    $region34: #{tpu_custom_call.1} parent=1 // pred_check
      _
    $region35: #{tpu_custom_call.1} parent=1 // pred_check_branch
      %69 = sbr.rel (0) target = $region37
    $region36: #{tpu_custom_call.1} parent=1 // pred_region
      %70 = dma.done [#allocation5], 2048
    $region37: #{tpu_custom_call.1} parent=1 // pred_fallthru
      _
    // Predicated region
    $region38: #{tpu_custom_call.1} parent=1 // pred_check
      _
    $region39: #{tpu_custom_call.1} parent=1 // pred_check_branch
      %72 = sbr.rel (0) target = $region41
    $region40: #{tpu_custom_call.1} parent=1 // pred_region
      %73 = dma.done [#allocation8], 1024
    $region41: #{tpu_custom_call.1} parent=1 // pred_fallthru
      _
    %v75 = vld [vmem:[#allocation2] sm:$0xff]
    %v76 = vld [vmem:[#allocation6] sm:$0xf]
    %v77 = vld [vmem:[#allocation6 + $0x4] sm:$0xf]
    %v78 = vld [vmem:[#allocation6 + $0x8] sm:$0xf]
    %v79 = vld [vmem:[#allocation6 + $0xc] sm:$0xf]
    %v80 = vld [vmem:[#allocation6 + $0x10] sm:$0xf]
    %v81 = vld [vmem:[#allocation6 + $0x14] sm:$0xf]
    %v82 = vld [vmem:[#allocation6 + $0x18] sm:$0xf]
    %v83 = vld [vmem:[#allocation6 + $0x1c] sm:$0xf]
    %v84 = vld [vmem:[#allocation6 + $0x20] sm:$0xf]
    %v85 = vld [vmem:[#allocation6 + $0x24] sm:$0xf]
    %v86 = vld [vmem:[#allocation6 + $0x28] sm:$0xf]
    %v87 = vld [vmem:[#allocation6 + $0x2c] sm:$0xf]
    %v88 = vld [vmem:[#allocation6 + $0x30] sm:$0xf]
    %v89 = vld [vmem:[#allocation6 + $0x34] sm:$0xf]
    %v90 = vld [vmem:[#allocation6 + $0x38] sm:$0xf]
    %v91 = vld [vmem:[#allocation6 + $0x3c] sm:$0xf]
    %v92 = vld [vmem:[#allocation6 + $0x40] sm:$0xf]
    %v93 = vld [vmem:[#allocation6 + $0x44] sm:$0xf]
    %v94 = vld [vmem:[#allocation6 + $0x48] sm:$0xf]
    %v95 = vld [vmem:[#allocation6 + $0x4c] sm:$0xf]
    %v96 = vld [vmem:[#allocation6 + $0x50] sm:$0xf]
    %v97 = vld [vmem:[#allocation6 + $0x54] sm:$0xf]
    %v98 = vld [vmem:[#allocation6 + $0x58] sm:$0xf]
    %v99 = vld [vmem:[#allocation6 + $0x5c] sm:$0xf]
    %v100 = vld [vmem:[#allocation6 + $0x60] sm:$0xf]
    %v101 = vld [vmem:[#allocation6 + $0x64] sm:$0xf]
    %v102 = vld [vmem:[#allocation6 + $0x68] sm:$0xf]
    %v103 = vld [vmem:[#allocation6 + $0x6c] sm:$0xf]
    %v104 = vld [vmem:[#allocation6 + $0x70] sm:$0xf]
    %v105 = vld [vmem:[#allocation6 + $0x74] sm:$0xf]
    %v106 = vld [vmem:[#allocation6 + $0x78] sm:$0xf]
    %v107 = vld [vmem:[#allocation6 + $0x7c] sm:$0xf]
    %v108 = vld [vmem:[%s3] sm:$0x1]
    %v110 = vlaneseq
    %v111 = vshrl.u32 %v110, 7
    %v112 = vsub.s32 0, %v111
    %v113 = vrot.slane %v108, %v112
    %v116 = vunpack.c.l.b16 %v75
    %v117 = vunpack.c.h.b16 %v75
    %v118 = vpack.c.b16 %v116, %v116
    %v119 = vpack.c.b16 %v117, %v117
    %v154 = vunpack.c.l.b16 %v76
    %v155 = vunpack.c.l.b16 %v77
    %v156 = vunpack.c.l.b16 %v78
    %v157 = vunpack.c.l.b16 %v79
    %v158 = vunpack.c.l.b16 %v80
    %v159 = vunpack.c.l.b16 %v81
    %v160 = vunpack.c.l.b16 %v82
    %v161 = vunpack.c.l.b16 %v83
    %v162 = vunpack.c.l.b16 %v84
    %v163 = vunpack.c.l.b16 %v85
    %v164 = vunpack.c.l.b16 %v86
    %v165 = vunpack.c.l.b16 %v87
    %v166 = vunpack.c.l.b16 %v88
    %v167 = vunpack.c.l.b16 %v89
    %v168 = vunpack.c.l.b16 %v90
    %v169 = vunpack.c.l.b16 %v91
    %v170 = vunpack.c.l.b16 %v92
    %v171 = vunpack.c.l.b16 %v93
    %v172 = vunpack.c.l.b16 %v94
    %v173 = vunpack.c.l.b16 %v95
    %v174 = vunpack.c.l.b16 %v96
    %v175 = vunpack.c.l.b16 %v97
    %v176 = vunpack.c.l.b16 %v98
    %v177 = vunpack.c.l.b16 %v99
    %v178 = vunpack.c.l.b16 %v100
    %v179 = vunpack.c.l.b16 %v101
    %v180 = vunpack.c.l.b16 %v102
    %v181 = vunpack.c.l.b16 %v103
    %v182 = vunpack.c.l.b16 %v104
    %v183 = vunpack.c.l.b16 %v105
    %v184 = vunpack.c.l.b16 %v106
    %v185 = vunpack.c.l.b16 %v107
    %v186 = vpack.c.b16 %v155, %v154
    %v187 = vpack.c.b16 %v157, %v156
    %v188 = vpack.c.b16 %v159, %v158
    %v189 = vpack.c.b16 %v161, %v160
    %v190 = vpack.c.b16 %v163, %v162
    %v191 = vpack.c.b16 %v165, %v164
    %v192 = vpack.c.b16 %v167, %v166
    %v193 = vpack.c.b16 %v169, %v168
    %v194 = vpack.c.b16 %v171, %v170
    %v195 = vpack.c.b16 %v173, %v172
    %v196 = vpack.c.b16 %v175, %v174
    %v197 = vpack.c.b16 %v177, %v176
    %v198 = vpack.c.b16 %v179, %v178
    %v199 = vpack.c.b16 %v181, %v180
    %v200 = vpack.c.b16 %v183, %v182
    %v201 = vpack.c.b16 %v185, %v184
    %218 = vmatprep.subr.bf16.mxu0 0
    %219 = vmatpush1.bf16.msra.mxu0 %v186
    %220 = vmatprep.subr.bf16.mxu0 0
    %221 = vmatpush1.bf16.msra.mxu0 %v187
    %222 = vmatprep.subr.bf16.mxu0 0
    %223 = vmatpush1.bf16.msra.mxu0 %v188
    %224 = vmatprep.subr.bf16.mxu0 0
    %225 = vmatpush1.bf16.msra.mxu0 %v189
    %226 = vmatprep.subr.bf16.mxu0 0
    %227 = vmatpush1.bf16.msra.mxu0 %v190
    %228 = vmatprep.subr.bf16.mxu0 0
    %229 = vmatpush1.bf16.msra.mxu0 %v191
    %230 = vmatprep.subr.bf16.mxu0 0
    %231 = vmatpush1.bf16.msra.mxu0 %v192
    %232 = vmatprep.subr.bf16.mxu0 0
    %233 = vmatpush1.bf16.msra.mxu0 %v193
    %234 = vmatprep.subr.bf16.mxu0 0
    %235 = vmatpush1.bf16.msra.mxu0 %v194
    %236 = vmatprep.subr.bf16.mxu0 0
    %237 = vmatpush1.bf16.msra.mxu0 %v195
    %238 = vmatprep.subr.bf16.mxu0 0
    %239 = vmatpush1.bf16.msra.mxu0 %v196
    %240 = vmatprep.subr.bf16.mxu0 0
    %241 = vmatpush1.bf16.msra.mxu0 %v197
    %242 = vmatprep.subr.bf16.mxu0 0
    %243 = vmatpush1.bf16.msra.mxu0 %v198
    %244 = vmatprep.subr.bf16.mxu0 0
    %245 = vmatpush1.bf16.msra.mxu0 %v199
    %246 = vmatprep.subr.bf16.mxu0 0
    %247 = vmatpush1.bf16.msra.mxu0 %v200
    %248 = vmatprep.subr.bf16.mxu0 0
    %249 = vmatpush1.bf16.msra.mxu0 %v201
    %250 = vmatprep.mubr.bf16.mxu0 %v119
    %251 = vmatmul.mubr.bf16.gmra.mrb[0].mxu0 %v118
    %v252 = vpop.f32.mrb[0].mxu0
    %v253 = vadd.f32 %v113, %v252
    %v254 = vpop.f32.mrb[0].mxu0
    %v255 = vpop.f32.mrb[0].mxu0
    %v256 = vpop.f32.mrb[0].mxu0
    %257 = vdwg.mxu0
    %v258 = vmax.f32 %v253, 0.0
    %v259 = vld [vmem:[#allocation4] sm:$0xf]
    %v260 = vld [vmem:[#allocation7] sm:$0xf]
    %v261 = vld [vmem:[#allocation7 + $0x4] sm:$0xf]
    %v262 = vld [vmem:[#allocation7 + $0x8] sm:$0xf]
    %v263 = vld [vmem:[#allocation7 + $0xc] sm:$0xf]
    %v264 = vld [vmem:[#allocation7 + $0x10] sm:$0xf]
    %v265 = vld [vmem:[#allocation7 + $0x14] sm:$0xf]
    %v266 = vld [vmem:[#allocation7 + $0x18] sm:$0xf]
    %v267 = vld [vmem:[#allocation7 + $0x1c] sm:$0xf]
    %v268 = vld [vmem:[#allocation7 + $0x20] sm:$0xf]
    %v269 = vld [vmem:[#allocation7 + $0x24] sm:$0xf]
    %v270 = vld [vmem:[#allocation7 + $0x28] sm:$0xf]
    %v271 = vld [vmem:[#allocation7 + $0x2c] sm:$0xf]
    %v272 = vld [vmem:[#allocation7 + $0x30] sm:$0xf]
    %v273 = vld [vmem:[#allocation7 + $0x34] sm:$0xf]
    %v274 = vld [vmem:[#allocation7 + $0x38] sm:$0xf]
    %v275 = vld [vmem:[#allocation7 + $0x3c] sm:$0xf]
    %v276 = vld [vmem:[%s5] sm:$0x1]
    %v278 = vlaneseq
    %v279 = vshrl.u32 %v278, 7
    %v280 = vsub.s32 0, %v279
    %v281 = vrot.slane %v276, %v280
    %v299 = vunpack.c.l.b16 %v260
    %v300 = vunpack.c.l.b16 %v261
    %v301 = vunpack.c.l.b16 %v262
    %v302 = vunpack.c.l.b16 %v263
    %v303 = vunpack.c.l.b16 %v264
    %v304 = vunpack.c.l.b16 %v265
    %v305 = vunpack.c.l.b16 %v266
    %v306 = vunpack.c.l.b16 %v267
    %v307 = vunpack.c.l.b16 %v268
    %v308 = vunpack.c.l.b16 %v269
    %v309 = vunpack.c.l.b16 %v270
    %v310 = vunpack.c.l.b16 %v271
    %v311 = vunpack.c.l.b16 %v272
    %v312 = vunpack.c.l.b16 %v273
    %v313 = vunpack.c.l.b16 %v274
    %v314 = vunpack.c.l.b16 %v275
    %v315 = vpack.c.b16 %v300, %v299
    %v316 = vpack.c.b16 %v302, %v301
    %v317 = vpack.c.b16 %v304, %v303
    %v318 = vpack.c.b16 %v306, %v305
    %v319 = vpack.c.b16 %v308, %v307
    %v320 = vpack.c.b16 %v310, %v309
    %v321 = vpack.c.b16 %v312, %v311
    %v322 = vpack.c.b16 %v314, %v313
    %331 = vmatprep.subr.bf16.mxu0 0
    %332 = vmatpush1.bf16.msra.mxu0 %v315
    %333 = vmatprep.subr.bf16.mxu0 0
    %334 = vmatpush1.bf16.msra.mxu0 %v316
    %335 = vmatprep.subr.bf16.mxu0 0
    %336 = vmatpush1.bf16.msra.mxu0 %v317
    %337 = vmatprep.subr.bf16.mxu0 0
    %338 = vmatpush1.bf16.msra.mxu0 %v318
    %339 = vmatprep.subr.bf16.mxu0 0
    %340 = vmatpush1.bf16.msra.mxu0 %v319
    %341 = vmatprep.subr.bf16.mxu0 0
    %342 = vmatpush1.bf16.msra.mxu0 %v320
    %343 = vmatprep.subr.bf16.mxu0 0
    %344 = vmatpush1.bf16.msra.mxu0 %v321
    %345 = vmatprep.subr.bf16.mxu0 0
    %346 = vmatpush1.bf16.msra.mxu0 %v322
    %347 = vmatprep.subr.bf16.mxu0 0
    %348 = vmatpush1.bf16.msra.mxu0 0
    %349 = vmatprep.subr.bf16.mxu0 0
    %350 = vmatpush1.bf16.msra.mxu0 0
    %351 = vmatprep.subr.bf16.mxu0 0
    %352 = vmatpush1.bf16.msra.mxu0 0
    %353 = vmatprep.subr.bf16.mxu0 0
    %354 = vmatpush1.bf16.msra.mxu0 0
    %355 = vmatprep.subr.bf16.mxu0 0
    %356 = vmatpush1.bf16.msra.mxu0 0
    %357 = vmatprep.subr.bf16.mxu0 0
    %358 = vmatpush1.bf16.msra.mxu0 0
    %359 = vmatprep.subr.bf16.mxu0 0
    %360 = vmatpush1.bf16.msra.mxu0 0
    %361 = vmatprep.subr.bf16.mxu0 0
    %362 = vmatpush1.bf16.msra.mxu0 0
    %363 = vmatprep.mubr.bf16.mxu0 0
    %364 = vmatmul.mubr.bf16.gmra.mrb[0].mxu0 %v259
    %v365 = vpop.f32.mrb[0].mxu0
    %v366 = vadd.f32 %v281, %v365
    %v367 = vpop.f32.mrb[0].mxu0
    %v368 = vpop.f32.mrb[0].mxu0
    %v369 = vpop.f32.mrb[0].mxu0
    %370 = vdwg.mxu0
    %v371 = vmax.f32 %v366, 0.0
    %v372 = vmul.f32 %v258, %v371
    %373 = vadd.xlane.f32.xlu0 %v372
    %v374 = vpop.xlane.xlu0 %373
    %v375 = vmul.f32 %v258, %v258
    %376 = vadd.xlane.f32.xlu0 %v375
    %v377 = vpop.xlane.xlu0 %376
    %v378 = vmul.f32 %v371, %v371
    %379 = vadd.xlane.f32.xlu0 %v378
    %v380 = vpop.xlane.xlu0 %379
    %v381 = vmul.f32 %v377, %v380
    %v382 = vmax.f32 %v381, 1e-16
    %v383 = vrsqrt.pop %v382
    %v384 = vmul.f32 %v374, %v383
    %vm385 = vcmask 7168
    %386 = vst.msk [vmem:[%s6] sm:$0xff] %vm385, %v384
    // Predicated region
    $region42: #{tpu_custom_call.1} parent=1 // pred_check
      _
    $region43: #{tpu_custom_call.1} parent=1 // pred_check_branch
      %388 = sbr.rel (0) target = $region45
    $region44: #{tpu_custom_call.1} parent=1 // pred_region
      _
    $region45: #{tpu_custom_call.1} parent=1 // pred_fallthru
      _
    // Predicated region
    $region46: #{tpu_custom_call.1} parent=1 // pred_check
      _
    $region47: #{tpu_custom_call.1} parent=1 // pred_check_branch
      %390 = sbr.rel (0) target = $region49
    $region48: #{tpu_custom_call.1} parent=1 // pred_region
      _
    $region49: #{tpu_custom_call.1} parent=1 // pred_fallthru
      _
    %391 = vsyncpa [#allocation3], 1
    %392 = vsyncpa [#allocation5], 1
    %393 = vsyncpa [#allocation8], 1

</llo_original>
